<compile_context>
chip_gen: v5e
topology: v5e:2x2
jax: 0.10.0
libtpu: 0.0.40
codegen_flags: <defaults>
</compile_context>

<pallas_src>
import functools

import jax
import jax.numpy as jnp
from jax.experimental import pallas as pl
from jax.experimental.pallas import tpu as pltpu


def _round_up(v, m):
    return ((v + m - 1) // m) * m


def _divisor_tiles(dim, quantum, cap):
    """Divisors of `dim` that are multiples of `quantum`, <= cap, descending.

    Falls back to [dim] (a full-dim block is always layout-legal)."""
    cap = max(1, min(cap, dim))
    cands = [dim] if dim <= cap else []
    t = (cap // quantum) * quantum
    while t >= quantum:
        if dim % t == 0 and t not in cands:
            cands.append(t)
        t -= quantum
    return cands if cands else [dim]


def _vmem_capacity_bytes():
    try:
        cap = getattr(pltpu.get_tpu_info(), "vmem_capacity_bytes", None)
        if cap:
            return int(cap)
    except Exception:
        pass
    return 64 << 20  # conservative fallback (v7x per-core VMEM)


def _classify_kernel(x_ref, w_ref, b_ref, o_ref, acc_ref, *,
                     hw_total, tile_hw, tile_c1, c1_tiles,
                     hw_tiles_per_split, hw_tiles_total, needs_mask):
    # x_ref:  (tile_n, tile_c1, tile_hw)   native dtype
    # w_ref:  (C1, C2) f32, pre-scaled by 1/HW (resident)
    # b_ref:  (1, C2) f32 (pre-scaled by 1/num_splits when the HW range is split)
    # o_ref:  (tile_n, C2)
    # acc_ref:(c1_tiles, tile_n, tile_c1) f32 running spatial sums
    ci = pl.program_id(2)
    k = pl.program_id(3)

    @pl.when(jnp.logical_and(ci == 0, k == 0))
    def _init():
        acc_ref[...] = jnp.zeros_like(acc_ref)

    x = x_ref[...]                              # no full-tile f32 upcast

    if needs_mask:
        # Global HW-tile index; only the very last one is ragged.
        g = pl.program_id(0) * hw_tiles_per_split + k
        is_last_hw = g == (hw_tiles_total - 1)

        @pl.when(is_last_hw)
        def _masked_sum():
            col = g * tile_hw + jax.lax.broadcasted_iota(
                jnp.int32, (1, 1, tile_hw), 2)
            xm = jnp.where(col < hw_total, x, jnp.zeros_like(x))
            acc_ref[ci] += jnp.sum(xm, axis=-1, dtype=jnp.float32)

        @pl.when(jnp.logical_not(is_last_hw))
        def _plain_sum():
            acc_ref[ci] += jnp.sum(x, axis=-1, dtype=jnp.float32)
    else:
        acc_ref[ci] += jnp.sum(x, axis=-1, dtype=jnp.float32)

    @pl.when(jnp.logical_and(ci == pl.num_programs(2) - 1,
                             k == pl.num_programs(3) - 1))
    def _finalize():
        # W already carries the 1/HW mean factor and is f32 (no in-kernel cast).
        out = jnp.dot(acc_ref[0], w_ref[0:tile_c1, :],
                      preferred_element_type=jnp.float32)
        for cc in range(1, c1_tiles):
            out = out + jnp.dot(acc_ref[cc],
                                w_ref[cc * tile_c1:(cc + 1) * tile_c1, :],
                                preferred_element_type=jnp.float32)
        o_ref[...] = (out + b_ref[...]).astype(o_ref.dtype)


def classify_forward(x, weight, bias, *, block_budget_bytes=None,
                     max_tile_hw=None, max_tile_c1=None, num_hw_splits=None,
                     out_dtype=None):
    """x: (N, C1, H, W) NCHW; weight: (C2, C1, 1, 1); bias: (C2,) -> (N, C2)."""
    n, c1, h, w = x.shape
    c2, c1_w, kh, kw = weight.shape
    assert c1_w == c1 and kh == 1 and kw == 1, "only k=1 Classify supported"
    # TODO(synk): k > 1 conv over the 1x1 pooled map and the list-input
    # multi-scale concat path are not implemented.

    hw = h * w
    out_dtype = x.dtype if out_dtype is None else out_dtype
    itemsize = jnp.dtype(x.dtype).itemsize

    x3 = x.reshape(n, c1, hw)                 # collapse spatial (contiguous)
    # Fold the 1/HW mean divisor into W once (tiny array, done in the wrapper):
    # pooled_sum @ (W / HW) == mean_pool @ W. Also keeps W f32 -> no kernel cast.
    w_mat = (weight.reshape(c2, c1).T).astype(jnp.float32) * jnp.float32(1.0 / hw)

    # ---- per-generation VMEM budget ----------------------------------------
    vmem_cap = _vmem_capacity_bytes()
    if block_budget_bytes is None:
        # 2x double-buffered x blocks + resident params/output/acc + headroom:
        # ~22 MiB/block on v7x (64 MiB VMEM), ~24 MiB on v5e/v6e (128 MiB).
        block_budget_bytes = max(4 << 20,
                                 min(24 << 20, (vmem_cap - (20 << 20)) // 2))

    # ---- tile sizing ---------------------------------------------------------
    n_cands = _divisor_tiles(n, 8, 128)
    c1_cands = _divisor_tiles(c1, 8, c1 if max_tile_c1 is None else max_tile_c1)
    hw_floor_pad = _round_up(min(hw, 128), 128)    # smallest useful lane tile

    def fits(tn, tc1):
        return tn * _round_up(tc1, 8) * hw_floor_pad * itemsize <= block_budget_bytes

    tile_n = n_cands[0]
    for t in n_cands:                  # shrink the batch tile first
        tile_n = t
        if fits(t, c1_cands[0]):
            break
    tile_c1 = c1_cands[0]
    for t in c1_cands:                 # then tile C1 (extra reduction axis)
        tile_c1 = t
        if fits(tile_n, t):
            break

    cap_elems = max(1, block_budget_bytes
                    // (tile_n * _round_up(tile_c1, 8) * itemsize))
    if max_tile_hw is not None:
        cap_elems = min(cap_elems, int(max_tile_hw))
    if hw <= cap_elems:
        tile_hw = hw
    else:
        tile_hw = max(128, (cap_elems // 128) * 128)
        t = tile_hw
        while t >= 128:                # prefer a divisor: no masked tail at all
            if hw % t == 0:
                tile_hw = t
                break
            t -= 128
    needs_mask = (hw % tile_hw) != 0

    n_tiles = int(pl.cdiv(n, tile_n))
    c1_tiles = int(pl.cdiv(c1, tile_c1))
    hw_tiles_total = int(pl.cdiv(hw, tile_hw))

    # ---- optional HW split: feed the 2nd TensorCore on small-batch v7x ------
    if num_hw_splits is None:
        splits = 2 if (n_tiles == 1 and hw_tiles_total >= 2
                       and hw_tiles_total % 2 == 0) else 1
    else:
        splits = max(1, int(num_hw_splits))
    if hw_tiles_total % splits != 0:
        splits = 1
    hw_tiles_per_split = hw_tiles_total // splits

    grid = (splits, n_tiles, c1_tiles, hw_tiles_per_split)

    x_spec = pl.BlockSpec(
        (tile_n, tile_c1, tile_hw),
        lambda s, i, ci, k: (i, ci, s * hw_tiles_per_split + k))
    w_spec = pl.BlockSpec((c1, c2), lambda s, i, ci, k: (0, 0))     # resident
    b_spec = pl.BlockSpec((1, c2), lambda s, i, ci, k: (0, 0))      # resident

    if splits == 1:
        bias_in = bias.reshape(1, c2).astype(jnp.float32)
        out_shape = jax.ShapeDtypeStruct((n, c2), out_dtype)
        out_spec = pl.BlockSpec((tile_n, c2), lambda s, i, ci, k: (i, 0))
        o_itemsize = jnp.dtype(out_dtype).itemsize
    else:
        # Each split adds bias/splits so the wrapper-side sum restores the bias.
        bias_in = bias.reshape(1, c2).astype(jnp.float32) * jnp.float32(1.0 / splits)
        out_shape = jax.ShapeDtypeStruct((splits, n, c2), jnp.float32)
        out_spec = pl.BlockSpec((None, tile_n, c2), lambda s, i, ci, k: (s, i, 0))
        o_itemsize = 4

    # Explicit scoped-VMEM accounting (double-buffered blocks + resident data).
    lane = lambda d: _round_up(d, 128)
    sub = lambda d: _round_up(d, 8)
    x_blk = tile_n * sub(tile_c1) * lane(tile_hw) * itemsize
    w_b = sub(c1) * lane(c2) * 4
    b_b = 8 * lane(c2) * 4
    o_blk = sub(tile_n) * lane(c2) * o_itemsize
    acc_b = c1_tiles * sub(tile_n) * lane(tile_c1) * 4
    need = 2 * x_blk + 2 * w_b + 2 * b_b + 2 * o_blk + acc_b + (2 << 20)
    vmem_limit = int(min(max(need, 16 << 20), vmem_cap))

    # Memory-bound hint for XLA's scheduler.
    cost = pl.CostEstimate(
        flops=int(n * c1 * hw + 2 * n * c1 * c2 * splits),
        transcendentals=0,
        bytes_accessed=int(n * c1 * hw * itemsize + c1 * c2 * 4 + c2 * 4
                           + splits * n * c2 * o_itemsize),
    )

    kernel = functools.partial(
        _classify_kernel, hw_total=hw, tile_hw=tile_hw, tile_c1=tile_c1,
        c1_tiles=c1_tiles, hw_tiles_per_split=hw_tiles_per_split,
        hw_tiles_total=hw_tiles_total, needs_mask=needs_mask)

    partials = pl.pallas_call(
        kernel,
        out_shape=out_shape,
        grid_spec=pltpu.PrefetchScalarGridSpec(
            num_scalar_prefetch=0,
            grid=grid,
            in_specs=[x_spec, w_spec, b_spec],
            out_specs=out_spec,
            scratch_shapes=[pltpu.VMEM((c1_tiles, tile_n, tile_c1), jnp.float32)],
        ),
        compiler_params=pltpu.CompilerParams(
            dimension_semantics=("parallel", "parallel", "arbitrary", "arbitrary"),
            vmem_limit_bytes=vmem_limit),
        cost_estimate=cost,
    )(x3, w_mat, bias_in)

    if splits == 1:
        return partials
    return partials.sum(axis=0).astype(out_dtype)


if __name__ == "__main__":
    key = jax.random.PRNGKey(0)

    def ref_classify(x, weight, bias):
        pooled = jnp.mean(x, axis=(2, 3))                          # (N, C1)
        w2d = weight.reshape(weight.shape[0], weight.shape[1])     # (C2, C1)
        return pooled @ w2d.T + bias[None, :]

    def check(x, weight, bias, **kw):
        out = classify_forward(x, weight, bias, **kw)
        jax.block_until_ready(out)
        ref = ref_classify(x, weight, bias)
        assert out.shape == ref.shape, (out.shape, ref.shape)
        assert jnp.allclose(out, ref, atol=1e-4, rtol=1e-4), \
            float(jnp.max(jnp.abs(out - ref)))

    # Module config: Classify(c1=4, c2=8, k=1, s=1); x (2, 4, 16, 16).
    k1, k2, k3, key = jax.random.split(key, 4)
    x = jax.random.normal(k1, (2, 4, 16, 16), dtype=jnp.float32)
    wgt = jax.random.normal(k2, (8, 4, 1, 1), dtype=jnp.float32) * 0.1
    b = jax.random.normal(k3, (8,), dtype=jnp.float32) * 0.1
    check(x, wgt, b)                                  # whole HW in one block
    check(x, wgt, b, max_tile_hw=128)                 # multi-step HW reduction

    # Ragged HW (18*18=324) -> masked last tile only.
    k1, k2, k3, key = jax.random.split(key, 4)
    x2 = jax.random.normal(k1, (2, 4, 18, 18), dtype=jnp.float32)
    w2 = jax.random.normal(k2, (8, 4, 1, 1), dtype=jnp.float32) * 0.1
    b2 = jax.random.normal(k3, (8,), dtype=jnp.float32) * 0.1
    check(x2, w2, b2, max_tile_hw=128)

    # C1 tiled as an extra "arbitrary" reduction axis.
    k1, k2, k3, key = jax.random.split(key, 4)
    xc = jax.random.normal(k1, (2, 16, 8, 8), dtype=jnp.float32)
    wc = jax.random.normal(k2, (8, 16, 1, 1), dtype=jnp.float32) * 0.1
    bc = jax.random.normal(k3, (8,), dtype=jnp.float32) * 0.1
    check(xc, wc, bc, max_tile_c1=8)

    # HW-range split across the leading "parallel" axis (v7x 2nd-core path).
    k1, k2, k3, key = jax.random.split(key, 4)
    xs = jax.random.normal(k1, (2, 4, 32, 32), dtype=jnp.float32)
    ws = jax.random.normal(k2, (8, 4, 1, 1), dtype=jnp.float32) * 0.1
    bs = jax.random.normal(k3, (8,), dtype=jnp.float32) * 0.1
    check(xs, ws, bs, max_tile_hw=128, num_hw_splits=2)

    print("KERNEL_OK")
</pallas_src>

<mosaic_0001>
module attributes {stable_mosaic.version = 11 : i64} {
  func.func @_classify_kernel(%arg0: i32, %arg1: i32, %arg2: i32, %arg3: i32, %arg4: memref<2x4x256xf32, #tpu.memory_space<vmem>>, %arg5: memref<4x8xf32, #tpu.memory_space<vmem>>, %arg6: memref<1x8xf32, #tpu.memory_space<vmem>>, %arg7: memref<2x8xf32, #tpu.memory_space<vmem>>, %arg8: memref<1x2x4xf32, #tpu.memory_space<vmem>>) attributes {dimension_semantics = [#tpu.dimension_semantics<parallel>, #tpu.dimension_semantics<parallel>, #tpu.dimension_semantics<arbitrary>, #tpu.dimension_semantics<arbitrary>], iteration_bounds = array<i64: 1, 1, 1, 1>, scalar_prefetch = 0 : i64, scratch_operands = 1 : i64, tpu.core_type = #tpu.core_type<tc>, window_params = [{transform_indices = @transform_0, window_bounds = array<i64: 2, 4, 256>}, {pipeline_mode = #tpu.pipeline_mode<synchronous>, transform_indices = @transform_1, window_bounds = array<i64: 4, 8>}, {pipeline_mode = #tpu.pipeline_mode<synchronous>, transform_indices = @transform_2, window_bounds = array<i64: 1, 8>}, {transform_indices = @transform_3, window_bounds = array<i64: 2, 8>}]} {
    %c0_i32 = arith.constant 0 : i32
    %0 = arith.cmpi eq, %arg2, %c0_i32 : i32
    %c0_i32_0 = arith.constant 0 : i32
    %1 = arith.cmpi eq, %arg3, %c0_i32_0 : i32
    %2 = arith.andi %0, %1 : i1
    %3 = arith.extui %2 : i1 to i32
    %c0_i32_1 = arith.constant 0 : i32
    %4 = arith.cmpi ne, %3, %c0_i32_1 : i32
    scf.if %4 {
      %cst_11 = arith.constant 0.000000e+00 : f32
      %20 = vector.broadcast %cst_11 : f32 to vector<1x2x4xf32>
      %c0_12 = arith.constant 0 : index
      %c0_13 = arith.constant 0 : index
      %c0_14 = arith.constant 0 : index
      %21 = vector.load %arg8[%c0_12, %c0_13, %c0_14] : memref<1x2x4xf32, #tpu.memory_space<vmem>>, vector<1x2x4xf32>
      tpu.vector_store %arg8[%c0_12, %c0_13, %c0_14], %20 {strides = array<i32>} : memref<1x2x4xf32, #tpu.memory_space<vmem>>, vector<1x2x4xf32>,
    } else {
    }
    %c0 = arith.constant 0 : index
    %c0_2 = arith.constant 0 : index
    %c0_3 = arith.constant 0 : index
    %5 = vector.load %arg4[%c0, %c0_2, %c0_3] : memref<2x4x256xf32, #tpu.memory_space<vmem>>, vector<2x4x256xf32>
    %6 = arith.index_cast %arg2 : i32 to index
    %c0_4 = arith.constant 0 : index
    %c0_5 = arith.constant 0 : index
    %7 = vector.load %arg8[%6, %c0_4, %c0_5] : memref<1x2x4xf32, #tpu.memory_space<vmem>>, vector<1x2x4xf32>
    %8 = vector.shape_cast %7 : vector<1x2x4xf32> to vector<2x4xf32>
    %cst = arith.constant dense<0.000000e+00> : vector<2x4xf32>
    %9 = vector.multi_reduction <add>, %5, %cst [2] : vector<2x4x256xf32> to vector<2x4xf32>
    %10 = arith.addf %8, %9 : vector<2x4xf32>
    %11 = arith.index_cast %arg2 : i32 to index
    %c0_6 = arith.constant 0 : index
    %c0_7 = arith.constant 0 : index
    %12 = vector.load %arg8[%11, %c0_6, %c0_7] : memref<1x2x4xf32, #tpu.memory_space<vmem>>, vector<1x2x4xf32>
    %13 = vector.shape_cast %12 : vector<1x2x4xf32> to vector<2x4xf32>
    %14 = vector.shape_cast %10 : vector<2x4xf32> to vector<1x2x4xf32>
    tpu.vector_store %arg8[%11, %c0_6, %c0_7], %14 {strides = array<i32>} : memref<1x2x4xf32, #tpu.memory_space<vmem>>, vector<1x2x4xf32>,
    %c0_i32_8 = arith.constant 0 : i32
    %15 = arith.cmpi eq, %arg2, %c0_i32_8 : i32
    %c0_i32_9 = arith.constant 0 : i32
    %16 = arith.cmpi eq, %arg3, %c0_i32_9 : i32
    %17 = arith.andi %15, %16 : i1
    %18 = arith.extui %17 : i1 to i32
    %c0_i32_10 = arith.constant 0 : i32
    %19 = arith.cmpi ne, %18, %c0_i32_10 : i32
    scf.if %19 {
      %c0_11 = arith.constant 0 : index
      %c0_12 = arith.constant 0 : index
      %c0_13 = arith.constant 0 : index
      %20 = vector.load %arg8[%c0_11, %c0_12, %c0_13] : memref<1x2x4xf32, #tpu.memory_space<vmem>>, vector<1x2x4xf32>
      %21 = vector.shape_cast %20 : vector<1x2x4xf32> to vector<2x4xf32>
      %c0_14 = arith.constant 0 : index
      %c0_15 = arith.constant 0 : index
      %22 = vector.load %arg5[%c0_14, %c0_15] : memref<4x8xf32, #tpu.memory_space<vmem>>, vector<4x8xf32>
      %cst_16 = arith.constant dense<0.000000e+00> : vector<2x8xf32>
      %23 = tpu.matmul %21, %22, %cst_16 {dimension_numbers = #tpu.dot_dimension_numbers<[1], [0], [0], [1], [0, 0, 1, 1], [], []>} : vector<2x4xf32>, vector<4x8xf32>, vector<2x8xf32> -> vector<2x8xf32>
      %c0_17 = arith.constant 0 : index
      %c0_18 = arith.constant 0 : index
      %24 = vector.load %arg6[%c0_17, %c0_18] : memref<1x8xf32, #tpu.memory_space<vmem>>, vector<1x8xf32>
      %25 = vector.broadcast %24 : vector<1x8xf32> to vector<2x8xf32>
      %26 = arith.addf %23, %25 : vector<2x8xf32>
      %c0_19 = arith.constant 0 : index
      %c0_20 = arith.constant 0 : index
      %27 = vector.load %arg7[%c0_19, %c0_20] : memref<2x8xf32, #tpu.memory_space<vmem>>, vector<2x8xf32>
      tpu.vector_store %arg7[%c0_19, %c0_20], %26 {strides = array<i32>} : memref<2x8xf32, #tpu.memory_space<vmem>>, vector<2x8xf32>,
    } else {
    }
    return
  }
  func.func @transform_0(%arg0: i32, %arg1: i32, %arg2: i32, %arg3: i32) -> (i32, i32, i32) {
    %c1_i32 = arith.constant 1 : i32
    %0 = arith.muli %arg0, %c1_i32 : i32
    %1 = arith.addi %0, %arg3 : i32
    %c0_i32 = arith.constant 0 : i32
    return %arg1, %arg2, %1 : i32, i32, i32
  }
  func.func @transform_1(%arg0: i32, %arg1: i32, %arg2: i32, %arg3: i32) -> (i32, i32) {
    %c0_i32 = arith.constant 0 : i32
    %c0_i32_0 = arith.constant 0 : i32
    %c0_i32_1 = arith.constant 0 : i32
    return %c0_i32, %c0_i32_0 : i32, i32
  }
  func.func @transform_2(%arg0: i32, %arg1: i32, %arg2: i32, %arg3: i32) -> (i32, i32) {
    %c0_i32 = arith.constant 0 : i32
    %c0_i32_0 = arith.constant 0 : i32
    %c0_i32_1 = arith.constant 0 : i32
    return %c0_i32, %c0_i32_0 : i32, i32
  }
  func.func @transform_3(%arg0: i32, %arg1: i32, %arg2: i32, %arg3: i32) -> (i32, i32) {
    %c0_i32 = arith.constant 0 : i32
    %c0_i32_0 = arith.constant 0 : i32
    return %arg1, %c0_i32 : i32, i32
  }
}

</mosaic_0001>

<llo_original>
// kernel: tpu_custom_call.1
$region0: #{tpu_custom_call.1}
  #allocation0 [shape = 'u32[]', space=smem, size = 0x4, offset = 0x4, fixed_abs, tag = 'smem constant byte address 0x4 - core index']
  #allocation1 [shape = 'u32[72,128]{1,0:T(1,128)}', space=vmem, size = 0x9000, scoped, tag = 'internal scratch']
  #allocation2 [shape = 'f32[1,2,4]{2,1,0:T(2,128)}', space=vmem, size = 0x400, scoped, tag = 'scratch operand']
  %s0 = inlined_call_operand.hbm [shape: f32[2,4,256], index: 0, kind: input, shape index: {}]
  %s1 = inlined_call_operand.hbm [shape: f32[4,8], index: 1, kind: input, shape index: {}]
  %s2 = inlined_call_operand.vmem [shape: f32[1,8], index: 2, kind: input, shape index: {}]
  %s3 = inlined_call_operand.hbm [shape: f32[2,8], index: 3, kind: output, shape index: {}]
  %s4 = sld [smem:[#allocation0]]
  $region38: #{tpu_custom_call.1} parent=0
    _
  %s6 = ssub.s32 1, %s4
  %s7 = scalar_select 0, %s6, %s4
  $region1: #{tpu_custom_call.1} parent=0
    #allocation3 [shape = 'u8[8192]{0}', space=vmem, size = 0x2000, scoped, tag = 'input window, operand 0, single buffered']
    #allocation4 [shape = 's32[1]{0}', space=sflag, size = 0x4, scoped, tag = 'scoped memory for tpu_custom_call.1']
    #allocation5 [shape = 's32[1]{0}', space=sflag, size = 0x4, scoped, tag = 'scoped memory for tpu_custom_call.1']
    #allocation6 [shape = 'u8[2048]{0}', space=vmem, size = 0x800, scoped, tag = 'input window, operand 1, single buffered']
    #allocation7 [shape = 's32[1]{0}', space=sflag, size = 0x4, scoped, tag = 'scoped memory for tpu_custom_call.1']
    #allocation8 [shape = 'u8[1024]{0}', space=vmem, size = 0x400, scoped, tag = 'output window, operand 0, single buffered']
    %8 = vsyncpa [#allocation4], 0
    %9 = vsyncpa [#allocation7], 0
    %10 = vsyncpa [#allocation5], 0
    // Predicated region
    $region2: #{tpu_custom_call.1} parent=1 // pred_check
      _
    $region3: #{tpu_custom_call.1} parent=1 // pred_check_branch
      %12 = sbr.rel (0) target = $region5
    $region4: #{tpu_custom_call.1} parent=1 // pred_region
      %s13 = sadd.s32 0, 0
      %s14 = smul.u32 2, %s13
      %16 = vsyncadd [#allocation4], 0
      %s17 = smul.addr %s14, 4
      %s18 = scalar_lea.hbm %s0, %s17
      %s19 = sshll.u32 %s18, 4
      %s20 = int_to_ptr.hbm [resolvable:$true] %s19
      %s21 = sshll.u32 [#allocation3], 4
      %s22 = int_to_ptr.vmem [resolvable:$true] %s21
      %27 = dma.hbm_to_vmem [thread:$0]  %s20, 256, %s22, [#allocation4], 128, 128, 8
    $region5: #{tpu_custom_call.1} parent=1 // pred_fallthru
      _
    // Predicated region
    $region6: #{tpu_custom_call.1} parent=1 // pred_check
      _
    $region7: #{tpu_custom_call.1} parent=1 // pred_check_branch
      %29 = sbr.rel (0) target = $region9
    $region8: #{tpu_custom_call.1} parent=1 // pred_region
      %31 = vsyncadd [#allocation7], 0
      %s33 = sshll.u32 %s1, 4
      %s34 = int_to_ptr.hbm [resolvable:$true] %s33
      %s35 = sshll.u32 [#allocation6], 4
      %s36 = int_to_ptr.vmem [resolvable:$true] %s35
      %38 = dma.hbm_to_vmem [thread:$0]  %s34, 64, %s36, [#allocation7]
    $region9: #{tpu_custom_call.1} parent=1 // pred_fallthru
      _
    // Predicated region
    $region10: #{tpu_custom_call.1} parent=1 // pred_check
      _
    $region11: #{tpu_custom_call.1} parent=1 // pred_check_branch
      %40 = sbr.rel (0) target = $region13
    $region12: #{tpu_custom_call.1} parent=1 // pred_region
      _
    $region13: #{tpu_custom_call.1} parent=1 // pred_fallthru
      _
    // Predicated region
    $region14: #{tpu_custom_call.1} parent=1 // pred_check
      _
    $region15: #{tpu_custom_call.1} parent=1 // pred_check_branch
      %42 = sbr.rel (0) target = $region17
    $region16: #{tpu_custom_call.1} parent=1 // pred_region
      %44 = dma.done [#allocation4], 256
    $region17: #{tpu_custom_call.1} parent=1 // pred_fallthru
      _
    // Predicated region
    $region18: #{tpu_custom_call.1} parent=1 // pred_check
      _
    $region19: #{tpu_custom_call.1} parent=1 // pred_check_branch
      %46 = sbr.rel (0) target = $region21
    $region20: #{tpu_custom_call.1} parent=1 // pred_region
      %48 = dma.done [#allocation7], 64
    $region21: #{tpu_custom_call.1} parent=1 // pred_fallthru
      _
    %s49 = sadd.s32 0, 0
    %s50 = smul.u32 2, %s49
    %p51 = scmp.eq.s32.totalorder 0, 0
    %p52 = scmp.eq.s32.totalorder 0, 0
    %p53 = pnand %p51, %p52
    %p54 = pneg %p53
    // Predicated region
    $region22: #{tpu_custom_call.1} parent=1 // pred_check
      _
    $region23: #{tpu_custom_call.1} parent=1 // pred_check_branch
      %56 = sbr.rel (%p53) target = $region25
    $region24: #{tpu_custom_call.1} parent=1 // pred_region
      %vm57 = vcmask 25600
      %58 = vst.msk [vmem:[#allocation2] sm:$0x3] %vm57, 0.0
    $region25: #{tpu_custom_call.1} parent=1 // pred_fallthru
      _
    %v59 = vld [vmem:[#allocation3] sm:$0xff]
    %v60 = vld [vmem:[#allocation3 + $0x8] sm:$0xff]
    %s61 = smul.u32 0, 2
    %s62 = scalar_lea.vmem [#allocation2], %s61
    %v63 = vld [vmem:[%s62] sm:$0x3]
    %66 = vst [vmem:[#allocation1] ss:$2 sm:$0xff] %v59
    %v67 = vld.sshfl [vmem:[#allocation1] sm:$0xff pattern:$0x75316420]
    %v68 = vld.sshfl [vmem:[#allocation1 + $0x8] sm:$0xff pattern:$0x75316420]
    %s69 = scalar_lea.vmem [#allocation1], 16
    %70 = vst [vmem:[%s69] ss:$2 sm:$0xff] %v60
    %v71 = vld.sshfl [vmem:[#allocation1 + $0x10] sm:$0xff pattern:$0x75316420]
    %v72 = vld.sshfl [vmem:[#allocation1 + $0x18] sm:$0xff pattern:$0x75316420]
    %vm77 = vcmask 1043456
    %v78 = vsel %vm77, %v67, 0.0
    %v79 = vsel %vm77, %v68, 0.0
    %v80 = vadd.f32 %v78, %v79
    %81 = vadd.xlane.f32.xlu0 %v80
    %v82 = vpop.xlane.xlu0 %81
    %v83 = vsel %vm77, %v71, 0.0
    %v84 = vsel %vm77, %v72, 0.0
    %v85 = vadd.f32 %v83, %v84
    %86 = vadd.xlane.f32.xlu0 %v85
    %v87 = vpop.xlane.xlu0 %86
    %v90 = vlaneseq
    %v91 = vand.u32 %v90, 127
    %v92 = vperm.slane %v82, %v91
    %v93 = vperm.slane %v87, %v91
    %vm94 = vcmask 1041409
    %v95 = vsel %vm94, %v93, %v92
    %v97 = vadd.f32 %v63, %v95
    %vm98 = vcmask 25600
    %99 = vst.msk [vmem:[%s62] sm:$0x3] %vm98, %v97
    // Predicated region
    $region26: #{tpu_custom_call.1} parent=1 // pred_check
      _
    $region27: #{tpu_custom_call.1} parent=1 // pred_check_branch
      %101 = sbr.rel (%p53) target = $region29
    $region28: #{tpu_custom_call.1} parent=1 // pred_region
      %v102 = vld [vmem:[#allocation2] sm:$0x3]
      %v103 = vld [vmem:[#allocation6] sm:$0xf]
      %v104 = vld [vmem:[%s2] sm:$0x1]
      %v106 = vperm.slane %v104, 0
      %vm108 = vcmask 31744
      %v110 = vsel %vm108, %v102, 0
      %v113 = vsel %vm77, %v103, 0
      %115 = vmatpush.msra.mxu0 0.0
      %116 = vmatpush.msra.mxu0 0.0
      %117 = vmatpush.msra.mxu0 0.0
      %118 = vmatpush.msra.mxu0 0.0
      %119 = vmatpush.msra.mxu0 0.0
      %120 = vmatpush.msra.mxu0 0.0
      %121 = vmatpush.msra.mxu0 0.0
      %122 = vmatpush.msra.mxu0 0.0
      %123 = vmatpush.msra.mxu0 0.0
      %124 = vmatpush.msra.mxu0 0.0
      %125 = vmatpush.msra.mxu0 0.0
      %126 = vmatpush.msra.mxu0 0.0
      %127 = vmatpush.msra.mxu0 0.0
      %128 = vmatpush.msra.mxu0 0.0
      %129 = vmatpush.msra.mxu0 0.0
      %130 = vmatpush.msra.mxu0 %v113
      %131 = vmatmul.f32.gmra.mxu0 %v110
      %v132 = vpop.f32.mrf.mxu0
      %v133 = vadd.f32 %v106, %v132
      %134 = vdwg.mxu0
      %vm135 = vcmask 58368
      %136 = vst.msk [vmem:[#allocation8] sm:$0x3] %vm135, %v133
    $region29: #{tpu_custom_call.1} parent=1 // pred_fallthru
      _
    // Predicated region
    $region30: #{tpu_custom_call.1} parent=1 // pred_check
      _
    $region31: #{tpu_custom_call.1} parent=1 // pred_check_branch
      %138 = sbr.rel (0) target = $region33
    $region32: #{tpu_custom_call.1} parent=1 // pred_region
      %140 = vsyncadd [#allocation5], 0
      %s142 = sshll.u32 [#allocation8], 4
      %s143 = int_to_ptr.vmem [resolvable:$true] %s142
      %s144 = sshll.u32 %s3, 4
      %s145 = int_to_ptr.hbm [resolvable:$true] %s144
      %147 = dma.vmem_to_hbm [thread:$0]  %s143, 32, %s145, [#allocation5]
    $region33: #{tpu_custom_call.1} parent=1 // pred_fallthru
      _
    // Predicated region
    $region34: #{tpu_custom_call.1} parent=1 // pred_check
      _
    $region35: #{tpu_custom_call.1} parent=1 // pred_check_branch
      %149 = sbr.rel (0) target = $region37
    $region36: #{tpu_custom_call.1} parent=1 // pred_region
      %151 = dma.done [#allocation5], 32
    $region37: #{tpu_custom_call.1} parent=1 // pred_fallthru
      _
    %152 = vsyncpa [#allocation4], 1
    %153 = vsyncpa [#allocation7], 1
    %154 = vsyncpa [#allocation5], 1

</llo_original>
